<compile_context>
chip_gen: v5e
topology: v5e:2x2
jax: 0.10.0
libtpu: 0.0.40
codegen_flags: <defaults>
</compile_context>

<pallas_src>
import functools

import jax
import jax.numpy as jnp
import numpy as np
from jax.experimental import pallas as pl
from jax.experimental.pallas import tpu as pltpu


def _gat_kernel(item_ref, ent_ref, adj_ref, wa1_ref, wa2_ref, out_ref, *, alpha, concat):
    item = item_ref[...]            # (tn, Fin)     stream dtype
    ent = ent_ref[...]              # (tn, M, Fin)  stream dtype
    adj = adj_ref[...]              # (tn, M)       bf16 mask carrier

    # Folded attention logits: cat(item@W, ent@W) @ a == item @ (W a1) + ent @ (W a2).
    # Elementwise multiplies stay in the stream dtype; reductions accumulate in f32.
    e_item = jnp.sum(item * wa1_ref[...], axis=-1, keepdims=True,
                     dtype=jnp.float32)                              # (tn, 1)
    e_ent = jnp.sum(ent * wa2_ref[...][None, :, :], axis=-1,
                    dtype=jnp.float32)                               # (tn, M)
    e = e_item + e_ent

    # LeakyReLU(alpha)
    e = jnp.where(e > 0, e, alpha * e)

    # Mask + row-wise softmax over the entity axis (exact reciprocal: (tn,1) only).
    masked = jnp.where(adj > 0, e, -9.0e15)
    m = jnp.max(masked, axis=-1, keepdims=True)
    p = jnp.exp(masked - m)
    att = p * (1.0 / jnp.sum(p, axis=-1, keepdims=True))

    # TODO(synk): F.dropout on the attention weights is training-mode only; this
    # kernel implements eval-mode semantics (documented contract, not a gap).

    # Weighted sum of entity embeddings on the VPU: multiply in the stream dtype,
    # accumulate the M-axis (sublane) reduction in f32. No MXU involvement.
    att_s = att.astype(ent.dtype)
    weighted = jnp.sum(att_s[:, :, None] * ent, axis=1, dtype=jnp.float32)   # (tn, Fin)

    h = weighted + item.astype(jnp.float32)
    if concat:
        # ELU(1); exp on the clamped negative branch avoids overflow on the dead path.
        h = jnp.where(h > 0, h, jnp.exp(jnp.minimum(h, 0.0)) - 1.0)
    out_ref[...] = h.astype(out_ref.dtype)


def _vmem_limit_bytes():
    """Generation-aware VMEM limit: ~75% of physical VMEM, capped at 96 MiB.

    v5e/v6e (128 MiB physical) -> 96 MiB; v7x (64 MiB physical) -> 48 MiB.
    Falls back to 48 MiB (safe on every generation) if the query is unavailable.
    """
    cap = None
    try:
        cap = getattr(pltpu.get_tpu_info(), "vmem_capacity_bytes", None)
    except Exception:  # pragma: no cover - defensive; query can fail off-device
        cap = None
    if not cap:
        return 48 * 1024 * 1024
    return int(min(cap * 3 // 4, 96 * 1024 * 1024))


def _choose_tn(n_rows, m, fin, stream_itemsize, adj_itemsize, out_itemsize,
               vmem_budget_bytes, row_align):
    """Row-tile size: as large as the VMEM budget allows, a multiple of `row_align`,
    capped so the grid keeps >=4 steps (>=2 per TensorCore) when N allows."""
    # Per-row VMEM: double-buffered streamed blocks + one f32 working copy of each.
    row_bytes = ((m * fin + fin) * (2 * stream_itemsize + 4)
                 + m * (2 * adj_itemsize + 4)
                 + fin * (2 * out_itemsize + 4))
    cap = max(row_align, (vmem_budget_bytes // max(row_bytes, 1)) // row_align * row_align)
    if n_rows >= 4 * row_align:        # megacore: >=2 pipelined steps per TC
        cap = min(cap, max(row_align, (n_rows // 4) // row_align * row_align))
    elif n_rows >= 2 * row_align:      # at least give both TCs one step
        cap = min(cap, max(row_align, (n_rows // 2) // row_align * row_align))
    n_rows_padded = ((n_rows + row_align - 1) // row_align) * row_align
    return min(cap, n_rows_padded)


def graph_attention_layer(item_embs, entity_embs, adj, W, a, *,
                          alpha=0.2, concat=True, tn=None, stream_dtype=None):
    """Pallas TPU forward of GraphAttentionLayer.forward (eval mode).

    stream_dtype: optional dtype (e.g. jnp.bfloat16) to stream item/entity in. Leave
    None unless the embeddings already live in that dtype or the cast fuses upstream —
    a standalone cast is an extra HBM pass on a memory-bound kernel.
    """
    N, Fin = item_embs.shape
    _, M, _ = entity_embs.shape
    Fout = W.shape[-1]

    # Fold projection + attention vector once, wrapper side, at full precision:
    #   cat(item@W, ent@W) @ a == item @ (W @ a[:Fout]) + ent @ (W @ a[Fout:])
    hp = jax.lax.Precision.HIGHEST
    Wf = W.astype(jnp.float32)
    af = a.astype(jnp.float32)
    wa1 = jnp.dot(Wf, af[:Fout], precision=hp).reshape(1, Fin)
    wa2 = jnp.dot(Wf, af[Fout:], precision=hp).reshape(1, Fin)

    if stream_dtype is not None:
        item_s = item_embs.astype(stream_dtype)
        ent_s = entity_embs.astype(stream_dtype)
    else:
        item_s, ent_s = item_embs, entity_embs
    sdt = item_s.dtype
    wa1 = wa1.astype(sdt)
    wa2 = wa2.astype(sdt)
    # adj carries only a ">0" mask: bf16 halves its stream without changing semantics.
    adj_s = adj.astype(jnp.bfloat16)

    stream_itemsize = jnp.dtype(sdt).itemsize
    out_itemsize = jnp.dtype(item_embs.dtype).itemsize
    row_align = 16  # bf16 packs 2 rows/sublane (adj is always bf16); harmless for f32
    vmem_limit = _vmem_limit_bytes()
    if tn is None:
        tn = _choose_tn(N, M, Fin, stream_itemsize, 2, out_itemsize,
                        vmem_budget_bytes=vmem_limit // 2, row_align=row_align)

    # Pad rows so tn | N (no single-giant-block fallback; padded rows are benign:
    # zero adj -> uniform attention over zero entities -> elu(0) = 0, then sliced off).
    n_pad = ((N + tn - 1) // tn) * tn
    if n_pad != N:
        pad = n_pad - N
        item_s = jnp.pad(item_s, ((0, pad), (0, 0)))
        ent_s = jnp.pad(ent_s, ((0, pad), (0, 0), (0, 0)))
        adj_s = jnp.pad(adj_s, ((0, pad), (0, 0)))

    kernel = functools.partial(_gat_kernel, alpha=float(alpha), concat=bool(concat))
    out = pl.pallas_call(
        kernel,
        out_shape=jax.ShapeDtypeStruct((n_pad, Fin), item_embs.dtype),
        grid_spec=pltpu.PrefetchScalarGridSpec(
            num_scalar_prefetch=0,
            grid=(n_pad // tn,),
            in_specs=[
                pl.BlockSpec((tn, Fin), lambda i: (i, 0)),
                pl.BlockSpec((tn, M, Fin), lambda i: (i, 0, 0)),
                pl.BlockSpec((tn, M), lambda i: (i, 0)),
                pl.BlockSpec((1, Fin), lambda i: (0, 0)),   # resident constant
                pl.BlockSpec((1, Fin), lambda i: (0, 0)),   # resident constant
            ],
            out_specs=pl.BlockSpec((tn, Fin), lambda i: (i, 0)),
        ),
        compiler_params=pltpu.CompilerParams(
            dimension_semantics=("parallel",),
            vmem_limit_bytes=vmem_limit,
        ),
    )(item_s, ent_s, adj_s, wa1, wa2)
    return out[:N] if n_pad != N else out


def _reference(item_embs, entity_embs, adj, W, a, *, alpha=0.2, concat=True):
    """Pure-JAX reference mirroring the PyTorch forward (eval mode), full f32."""
    Fout = W.shape[-1]
    hp = jax.lax.Precision.HIGHEST
    Wh = jnp.dot(item_embs, W, precision=hp)                         # (N, Fout)
    We = jnp.einsum('nmf,fo->nmo', entity_embs, W, precision=hp)     # (N, M, Fout)
    Wh_exp = jnp.broadcast_to(Wh[:, None, :], We.shape)
    a_in = jnp.concatenate([Wh_exp, We], axis=-1)                    # (N, M, 2*Fout)
    e = jnp.einsum('nmk,kl->nml', a_in, a, precision=hp)[..., 0]
    e = jnp.where(e > 0, e, alpha * e)
    masked = jnp.where(adj > 0, e, -9.0e15)
    att = jax.nn.softmax(masked, axis=1)
    weighted = jnp.einsum('nm,nmf->nf', att, entity_embs, precision=hp)
    h = weighted + item_embs
    if concat:
        return jnp.where(h > 0, h, jnp.exp(jnp.minimum(h, 0.0)) - 1.0)
    return h


if __name__ == "__main__":
    # Small shapes implied by forward(): item (N, Fin), entity (N, M, Fin), adj (N, M).
    # N=40 deliberately exercises the multi-step grid + row-padding path (tn=16).
    N, M, Fin, Fout = 40, 16, 32, 16
    alpha = 0.2
    concat = True

    key = jax.random.PRNGKey(0)
    k_item, k_ent, k_adj, k_w, k_a = jax.random.split(key, 5)

    item_embs = jax.random.normal(k_item, (N, Fin), dtype=jnp.float32)
    entity_embs = jax.random.normal(k_ent, (N, M, Fin), dtype=jnp.float32)
    adj = (jax.random.uniform(k_adj, (N, M)) > 0.3).astype(jnp.float32)

    # deterministic xavier_uniform(gain=1.414)-style init
    def xavier(k, shape, gain=1.414):
        fan_in, fan_out = shape[0], shape[1]
        bound = gain * np.sqrt(6.0 / (fan_in + fan_out))
        return jax.random.uniform(k, shape, jnp.float32, -bound, bound)

    W = xavier(k_w, (Fin, Fout))
    a = xavier(k_a, (2 * Fout, 1))

    ref = _reference(item_embs, entity_embs, adj, W, a, alpha=alpha, concat=concat)

    # Default path: f32 streams, f32 math — strict parity with the PyTorch forward.
    out = graph_attention_layer(item_embs, entity_embs, adj, W, a,
                                alpha=alpha, concat=concat)
    out = jax.block_until_ready(out)
    np.testing.assert_allclose(np.asarray(out), np.asarray(ref), rtol=2e-3, atol=2e-3)

    # Opt-in bf16 streaming (bandwidth path for v6e/v7x): loose tolerance vs f32 ref.
    out_bf16 = graph_attention_layer(item_embs, entity_embs, adj, W, a,
                                     alpha=alpha, concat=concat,
                                     stream_dtype=jnp.bfloat16)
    out_bf16 = jax.block_until_ready(out_bf16)
    np.testing.assert_allclose(np.asarray(out_bf16), np.asarray(ref),
                               rtol=7.5e-2, atol=7.5e-2)

    print("KERNEL_OK")
</pallas_src>

<mosaic_0001>
module attributes {stable_mosaic.version = 11 : i64} {
  func.func @_gat_kernel(%arg0: i32, %arg1: memref<16x32xf32, #tpu.memory_space<vmem>>, %arg2: memref<16x16x32xf32, #tpu.memory_space<vmem>>, %arg3: memref<16x16xbf16, #tpu.memory_space<vmem>>, %arg4: memref<1x32xf32, #tpu.memory_space<vmem>>, %arg5: memref<1x32xf32, #tpu.memory_space<vmem>>, %arg6: memref<16x32xf32, #tpu.memory_space<vmem>>) attributes {dimension_semantics = [#tpu.dimension_semantics<parallel>], iteration_bounds = array<i64: 3>, scalar_prefetch = 0 : i64, scratch_operands = 0 : i64, tpu.core_type = #tpu.core_type<tc>, window_params = [{transform_indices = @transform_0, window_bounds = array<i64: 16, 32>}, {transform_indices = @transform_1, window_bounds = array<i64: 16, 16, 32>}, {transform_indices = @transform_2, window_bounds = array<i64: 16, 16>}, {pipeline_mode = #tpu.pipeline_mode<synchronous>, transform_indices = @transform_3, window_bounds = array<i64: 1, 32>}, {pipeline_mode = #tpu.pipeline_mode<synchronous>, transform_indices = @transform_4, window_bounds = array<i64: 1, 32>}, {transform_indices = @transform_5, window_bounds = array<i64: 16, 32>}]} {
    %c0 = arith.constant 0 : index
    %c0_0 = arith.constant 0 : index
    %0 = vector.load %arg1[%c0, %c0_0] : memref<16x32xf32, #tpu.memory_space<vmem>>, vector<16x32xf32>
    %c0_1 = arith.constant 0 : index
    %c0_2 = arith.constant 0 : index
    %c0_3 = arith.constant 0 : index
    %1 = vector.load %arg2[%c0_1, %c0_2, %c0_3] : memref<16x16x32xf32, #tpu.memory_space<vmem>>, vector<16x16x32xf32>
    %c0_4 = arith.constant 0 : index
    %c0_5 = arith.constant 0 : index
    %2 = vector.load %arg3[%c0_4, %c0_5] : memref<16x16xbf16, #tpu.memory_space<vmem>>, vector<16x16xbf16>
    %c0_6 = arith.constant 0 : index
    %c0_7 = arith.constant 0 : index
    %3 = vector.load %arg4[%c0_6, %c0_7] : memref<1x32xf32, #tpu.memory_space<vmem>>, vector<1x32xf32>
    %4 = vector.broadcast %3 : vector<1x32xf32> to vector<16x32xf32>
    %5 = arith.mulf %0, %4 : vector<16x32xf32>
    %cst = arith.constant dense<0.000000e+00> : vector<16xf32>
    %6 = vector.multi_reduction <add>, %5, %cst [1] : vector<16x32xf32> to vector<16xf32>
    %7 = vector.shape_cast %6 : vector<16xf32> to vector<16x1xf32>
    %c0_8 = arith.constant 0 : index
    %c0_9 = arith.constant 0 : index
    %8 = vector.load %arg5[%c0_8, %c0_9] : memref<1x32xf32, #tpu.memory_space<vmem>>, vector<1x32xf32>
    %9 = vector.shape_cast %8 : vector<1x32xf32> to vector<1x1x32xf32>
    %10 = vector.broadcast %9 : vector<1x1x32xf32> to vector<16x16x32xf32>
    %11 = arith.mulf %1, %10 : vector<16x16x32xf32>
    %cst_10 = arith.constant dense<0.000000e+00> : vector<16x16xf32>
    %12 = vector.multi_reduction <add>, %11, %cst_10 [2] : vector<16x16x32xf32> to vector<16x16xf32>
    %13 = vector.broadcast %7 : vector<16x1xf32> to vector<16x16xf32>
    %14 = arith.addf %13, %12 : vector<16x16xf32>
    %cst_11 = arith.constant 0.000000e+00 : f32
    %15 = vector.broadcast %cst_11 : f32 to vector<16x16xf32>
    %16 = arith.cmpf ogt, %14, %15 : vector<16x16xf32>
    %cst_12 = arith.constant 2.000000e-01 : f32
    %17 = vector.broadcast %cst_12 : f32 to vector<16x16xf32>
    %18 = arith.mulf %17, %14 : vector<16x16xf32>
    %19 = arith.select %16, %14, %18 : vector<16x16xi1>, vector<16x16xf32>
    %cst_13 = arith.constant 0.000000e+00 : bf16
    %20 = vector.broadcast %cst_13 : bf16 to vector<16x16xbf16>
    %21 = arith.cmpf ogt, %2, %20 : vector<16x16xbf16>
    %cst_14 = arith.constant -9.000000e+15 : f32
    %22 = vector.broadcast %cst_14 : f32 to vector<16x16xf32>
    %23 = arith.select %21, %19, %22 : vector<16x16xi1>, vector<16x16xf32>
    %cst_15 = arith.constant dense<0xFF800000> : vector<16xf32>
    %24 = vector.multi_reduction <maximumf>, %23, %cst_15 [1] : vector<16x16xf32> to vector<16xf32>
    %25 = vector.shape_cast %24 : vector<16xf32> to vector<16x1xf32>
    %26 = vector.broadcast %25 : vector<16x1xf32> to vector<16x16xf32>
    %27 = arith.subf %23, %26 : vector<16x16xf32>
    %28 = math.exp %27 : vector<16x16xf32>
    %cst_16 = arith.constant dense<0.000000e+00> : vector<16xf32>
    %29 = vector.multi_reduction <add>, %28, %cst_16 [1] : vector<16x16xf32> to vector<16xf32>
    %30 = vector.shape_cast %29 : vector<16xf32> to vector<16x1xf32>
    %cst_17 = arith.constant 1.000000e+00 : f32
    %31 = vector.broadcast %cst_17 : f32 to vector<16x1xf32>
    %32 = arith.divf %31, %30 : vector<16x1xf32>
    %33 = vector.broadcast %32 : vector<16x1xf32> to vector<16x16xf32>
    %34 = arith.mulf %28, %33 : vector<16x16xf32>
    %35 = vector.shape_cast %34 : vector<16x16xf32> to vector<16x16x1xf32>
    %36 = vector.broadcast %35 : vector<16x16x1xf32> to vector<16x16x32xf32>
    %37 = arith.mulf %36, %1 : vector<16x16x32xf32>
    %cst_18 = arith.constant dense<0.000000e+00> : vector<16x32xf32>
    %38 = vector.multi_reduction <add>, %37, %cst_18 [1] : vector<16x16x32xf32> to vector<16x32xf32>
    %39 = arith.addf %38, %0 : vector<16x32xf32>
    %cst_19 = arith.constant 0.000000e+00 : f32
    %40 = vector.broadcast %cst_19 : f32 to vector<16x32xf32>
    %41 = arith.cmpf ogt, %39, %40 : vector<16x32xf32>
    %cst_20 = arith.constant 0.000000e+00 : f32
    %42 = vector.broadcast %cst_20 : f32 to vector<16x32xf32>
    %43 = arith.minimumf %39, %42 : vector<16x32xf32>
    %44 = math.exp %43 : vector<16x32xf32>
    %cst_21 = arith.constant 1.000000e+00 : f32
    %45 = vector.broadcast %cst_21 : f32 to vector<16x32xf32>
    %46 = arith.subf %44, %45 : vector<16x32xf32>
    %47 = arith.select %41, %39, %46 : vector<16x32xi1>, vector<16x32xf32>
    %c0_22 = arith.constant 0 : index
    %c0_23 = arith.constant 0 : index
    %48 = vector.load %arg6[%c0_22, %c0_23] : memref<16x32xf32, #tpu.memory_space<vmem>>, vector<16x32xf32>
    tpu.vector_store %arg6[%c0_22, %c0_23], %47 {strides = array<i32>} : memref<16x32xf32, #tpu.memory_space<vmem>>, vector<16x32xf32>,
    return
  }
  func.func @transform_0(%arg0: i32) -> (i32, i32) {
    %c0_i32 = arith.constant 0 : i32
    %c0_i32_0 = arith.constant 0 : i32
    return %arg0, %c0_i32 : i32, i32
  }
  func.func @transform_1(%arg0: i32) -> (i32, i32, i32) {
    %c0_i32 = arith.constant 0 : i32
    %c0_i32_0 = arith.constant 0 : i32
    %c0_i32_1 = arith.constant 0 : i32
    return %arg0, %c0_i32, %c0_i32_0 : i32, i32, i32
  }
  func.func @transform_2(%arg0: i32) -> (i32, i32) {
    %c0_i32 = arith.constant 0 : i32
    %c0_i32_0 = arith.constant 0 : i32
    return %arg0, %c0_i32 : i32, i32
  }
  func.func @transform_3(%arg0: i32) -> (i32, i32) {
    %c0_i32 = arith.constant 0 : i32
    %c0_i32_0 = arith.constant 0 : i32
    %c0_i32_1 = arith.constant 0 : i32
    return %c0_i32, %c0_i32_0 : i32, i32
  }
  func.func @transform_4(%arg0: i32) -> (i32, i32) {
    %c0_i32 = arith.constant 0 : i32
    %c0_i32_0 = arith.constant 0 : i32
    %c0_i32_1 = arith.constant 0 : i32
    return %c0_i32, %c0_i32_0 : i32, i32
  }
  func.func @transform_5(%arg0: i32) -> (i32, i32) {
    %c0_i32 = arith.constant 0 : i32
    %c0_i32_0 = arith.constant 0 : i32
    return %arg0, %c0_i32 : i32, i32
  }
}

</mosaic_0001>

<llo_original>
// kernel: tpu_custom_call.1
$region0: #{tpu_custom_call.1}
  #allocation0 [shape = 'u32[]', space=smem, size = 0x4, offset = 0x4, fixed_abs, tag = 'smem constant byte address 0x4 - core index']
  #allocation1 [shape = 'u32[72,128]{1,0:T(1,128)}', space=vmem, size = 0x9000, scoped, tag = 'internal scratch']
  %s0 = inlined_call_operand.vmem [shape: f32[48,32], index: 0, kind: input, shape index: {}]
  %s1 = inlined_call_operand.vmem [shape: f32[48,16,32], index: 1, kind: input, shape index: {}]
  %s2 = inlined_call_operand.vmem [shape: bf16[48,16], index: 2, kind: input, shape index: {}]
  %s3 = inlined_call_operand.vmem [shape: f32[1,32], index: 3, kind: input, shape index: {}]
  %s4 = inlined_call_operand.vmem [shape: f32[1,32], index: 4, kind: input, shape index: {}]
  %s5 = inlined_call_operand.vmem [shape: f32[48,32], index: 5, kind: output, shape index: {}]
  %s6 = sld [smem:[#allocation0]]
  $region53: #{tpu_custom_call.1} parent=0
    _
  %s8 = ssub.s32 1, %s6
  %s9 = scalar_select 0, %s8, %s6
  loop: start=0, step=1, limit=5
  $region2: #{tpu_custom_call.1} parent=0 // loop_pre_header
    _
  $region3: #{tpu_custom_call.1} parent=0 // loop_header
    %s11 = sphi 0, %s15
    %p12 = scmp.ge.s32.totalorder %s11, 5
    %s21 = sphi 0, %s23
    %s24 = sphi 0, %s21
    %s25 = sphi 0, %s24
    %s41 = sphi 0, %s25
    %s47 = sphi 0, %s49
    %s50 = sphi 0, %s47
    %s51 = sphi 0, %s50
    %s67 = sphi 0, %s51
    %s73 = sphi 0, %s75
    %s76 = sphi 0, %s73
    %s77 = sphi 0, %s76
    %s93 = sphi 0, %s77
    %s97 = sphi 0, %s97
    %s99 = sphi 0, %s97
    %s100 = sphi 0, %s99
    %s114 = sphi 0, %s100
    %s118 = sphi 0, %s118
    %s120 = sphi 0, %s118
    %s121 = sphi 0, %s120
    %s135 = sphi 0, %s121
    %s141 = sphi 0, %s143
    %s144 = sphi 0, %s141
    %s145 = sphi 0, %s144
    %s161 = sphi 0, %s145
  $region4: #{tpu_custom_call.1} parent=0 // loop_header_branch
    %14 = sbr.rel (%p12) target = $region8
  $region5: #{tpu_custom_call.1} parent=0 // loop_body
    %s16 = ssub.s32 %s11, 1
    %s17 = ssub.s32 %s11, 2
    %s18 = sadd.s32 %s11, 1
    %s19 = ssub.s32 %s11, %s18
    %p20 = scmp.eq.s32.totalorder %s19, 0
    %s22 = sadd.s32 %s21, 1
    %s23 = scalar_select %p20, %s21, %s22
    %p26 = pneg %p20
    %p27 = scmp.eq.s32.totalorder %s11, 2
    %p28 = por %p26, %p27
    %p29 = scmp.ne.s32.totalorder %s21, %s24
    %p30 = scmp.eq.s32.totalorder %s11, 0
    %p31 = por %p29, %p30
    %p32 = scmp.ne.s32.totalorder %s21, %s24
    %p33 = scmp.eq.s32.totalorder %s16, 2
    %p34 = por %p32, %p33
    %p35 = scmp.ne.s32.totalorder %s24, %s25
    %p36 = scmp.eq.s32.totalorder %s16, 0
    %p37 = por %p35, %p36
    %p38 = scmp.ne.s32.totalorder %s24, %s25
    %p39 = scmp.eq.s32.totalorder %s17, 2
    %p40 = por %p38, %p39
    %p42 = scmp.ne.s32.totalorder %s25, %s41
    %p43 = scmp.eq.s32.totalorder %s17, 0
    %p44 = por %p42, %p43
    %s45 = ssub.s32 %s11, %s18
    %p46 = scmp.eq.s32.totalorder %s45, 0
    %s48 = sadd.s32 %s47, 1
    %s49 = scalar_select %p46, %s47, %s48
    %p52 = pneg %p46
    %p53 = scmp.eq.s32.totalorder %s11, 2
    %p54 = por %p52, %p53
    %p55 = scmp.ne.s32.totalorder %s47, %s50
    %p56 = scmp.eq.s32.totalorder %s11, 0
    %p57 = por %p55, %p56
    %p58 = scmp.ne.s32.totalorder %s47, %s50
    %p59 = scmp.eq.s32.totalorder %s16, 2
    %p60 = por %p58, %p59
    %p61 = scmp.ne.s32.totalorder %s50, %s51
    %p62 = scmp.eq.s32.totalorder %s16, 0
    %p63 = por %p61, %p62
    %p64 = scmp.ne.s32.totalorder %s50, %s51
    %p65 = scmp.eq.s32.totalorder %s17, 2
    %p66 = por %p64, %p65
    %p68 = scmp.ne.s32.totalorder %s51, %s67
    %p69 = scmp.eq.s32.totalorder %s17, 0
    %p70 = por %p68, %p69
    %s71 = ssub.s32 %s11, %s18
    %p72 = scmp.eq.s32.totalorder %s71, 0
    %s74 = sadd.s32 %s73, 1
    %s75 = scalar_select %p72, %s73, %s74
    %p78 = pneg %p72
    %p79 = scmp.eq.s32.totalorder %s11, 2
    %p80 = por %p78, %p79
    %p81 = scmp.ne.s32.totalorder %s73, %s76
    %p82 = scmp.eq.s32.totalorder %s11, 0
    %p83 = por %p81, %p82
    %p84 = scmp.ne.s32.totalorder %s73, %s76
    %p85 = scmp.eq.s32.totalorder %s16, 2
    %p86 = por %p84, %p85
    %p87 = scmp.ne.s32.totalorder %s76, %s77
    %p88 = scmp.eq.s32.totalorder %s16, 0
    %p89 = por %p87, %p88
    %p90 = scmp.ne.s32.totalorder %s76, %s77
    %p91 = scmp.eq.s32.totalorder %s17, 2
    %p92 = por %p90, %p91
    %p94 = scmp.ne.s32.totalorder %s77, %s93
    %p95 = scmp.eq.s32.totalorder %s17, 0
    %p96 = por %p94, %p95
    %s98 = sadd.s32 %s97, 1
    %p101 = scmp.eq.s32.totalorder %s11, 2
    %p102 = scmp.ne.s32.totalorder %s97, %s99
    %p103 = scmp.eq.s32.totalorder %s11, 0
    %p104 = por %p102, %p103
    %p105 = scmp.ne.s32.totalorder %s97, %s99
    %p106 = scmp.eq.s32.totalorder %s16, 2
    %p107 = por %p105, %p106
    %p108 = scmp.ne.s32.totalorder %s99, %s100
    %p109 = scmp.eq.s32.totalorder %s16, 0
    %p110 = por %p108, %p109
    %p111 = scmp.ne.s32.totalorder %s99, %s100
    %p112 = scmp.eq.s32.totalorder %s17, 2
    %p113 = por %p111, %p112
    %p115 = scmp.ne.s32.totalorder %s100, %s114
    %p116 = scmp.eq.s32.totalorder %s17, 0
    %p117 = por %p115, %p116
    %s119 = sadd.s32 %s118, 1
    %p122 = scmp.eq.s32.totalorder %s11, 2
    %p123 = scmp.ne.s32.totalorder %s118, %s120
    %p124 = scmp.eq.s32.totalorder %s11, 0
    %p125 = por %p123, %p124
    %p126 = scmp.ne.s32.totalorder %s118, %s120
    %p127 = scmp.eq.s32.totalorder %s16, 2
    %p128 = por %p126, %p127
    %p129 = scmp.ne.s32.totalorder %s120, %s121
    %p130 = scmp.eq.s32.totalorder %s16, 0
    %p131 = por %p129, %p130
    %p132 = scmp.ne.s32.totalorder %s120, %s121
    %p133 = scmp.eq.s32.totalorder %s17, 2
    %p134 = por %p132, %p133
    %p136 = scmp.ne.s32.totalorder %s121, %s135
    %p137 = scmp.eq.s32.totalorder %s17, 0
    %p138 = por %p136, %p137
    %s139 = ssub.s32 %s11, %s18
    %p140 = scmp.eq.s32.totalorder %s139, 0
    %s142 = sadd.s32 %s141, 1
    %s143 = scalar_select %p140, %s141, %s142
    %p146 = pneg %p140
    %p147 = scmp.eq.s32.totalorder %s11, 2
    %p148 = por %p146, %p147
    %p149 = scmp.ne.s32.totalorder %s141, %s144
    %p150 = scmp.eq.s32.totalorder %s11, 0
    %p151 = por %p149, %p150
    %p152 = scmp.ne.s32.totalorder %s141, %s144
    %p153 = scmp.eq.s32.totalorder %s16, 2
    %p154 = por %p152, %p153
    %p155 = scmp.ne.s32.totalorder %s144, %s145
    %p156 = scmp.eq.s32.totalorder %s16, 0
    %p157 = por %p155, %p156
    %p158 = scmp.ne.s32.totalorder %s144, %s145
    %p159 = scmp.eq.s32.totalorder %s17, 2
    %p160 = por %p158, %p159
    %p162 = scmp.ne.s32.totalorder %s145, %s161
    %p163 = scmp.eq.s32.totalorder %s17, 0
    %p164 = por %p162, %p163
    %p165 = scmp.le.s32.totalorder 1, %s11
    %p166 = scmp.lt.s32.totalorder %s11, 4
    %p167 = pnand %p165, %p166
    %p168 = pneg %p167
    // Predicated region
    $region9: #{tpu_custom_call.1} parent=5 // pred_check
      _
    $region10: #{tpu_custom_call.1} parent=5 // pred_check_branch
      %170 = sbr.rel (%p167) target = $region12
    $region11: #{tpu_custom_call.1} parent=5 // pred_region
      %s171 = ssub.s32 %s11, 1
      // Predicated region
      $region13: #{tpu_custom_call.1} parent=11 // pred_check
        %p172 = pneg %p110
      $region14: #{tpu_custom_call.1} parent=11 // pred_check_branch
        %174 = sbr.rel (%p172) target = $region16
      $region15: #{tpu_custom_call.1} parent=11 // pred_region
        _
      $region16: #{tpu_custom_call.1} parent=11 // pred_fallthru
        _
      // Predicated region
      $region17: #{tpu_custom_call.1} parent=11 // pred_check
        %p175 = pneg %p131
      $region18: #{tpu_custom_call.1} parent=11 // pred_check_branch
        %177 = sbr.rel (%p175) target = $region20
      $region19: #{tpu_custom_call.1} parent=11 // pred_region
        _
      $region20: #{tpu_custom_call.1} parent=11 // pred_fallthru
        _
    $region12: #{tpu_custom_call.1} parent=5 // pred_fallthru
      _
    %p178 = scmp.lt.s32.totalorder %s11, 3
    // Predicated region
    $region21: #{tpu_custom_call.1} parent=5 // pred_check
      %p179 = pneg %p178
    $region22: #{tpu_custom_call.1} parent=5 // pred_check_branch
      %181 = sbr.rel (%p179) target = $region24
    $region23: #{tpu_custom_call.1} parent=5 // pred_region
      // Predicated region
      $region25: #{tpu_custom_call.1} parent=23 // pred_check
        %p182 = pneg %p31
      $region26: #{tpu_custom_call.1} parent=23 // pred_check_branch
        %184 = sbr.rel (%p182) target = $region28
      $region27: #{tpu_custom_call.1} parent=23 // pred_region
        %s185 = smul.u32 2, %s11
        %p186 = scmp.lt.s32.totalorder %s185, 5
        %s187 = scalar_select %p186, %s185, 5
        %s188 = smul.addr %s187, 8
        %s189 = scalar_lea.vmem %s0, %s188
        %s190 = smul.u32 2, %s11
      $region28: #{tpu_custom_call.1} parent=23 // pred_fallthru
        _
      // Predicated region
      $region29: #{tpu_custom_call.1} parent=23 // pred_check
        %p191 = pneg %p57
      $region30: #{tpu_custom_call.1} parent=23 // pred_check_branch
        %193 = sbr.rel (%p191) target = $region32
      $region31: #{tpu_custom_call.1} parent=23 // pred_region
        %s194 = smul.u32 16, %s11
        %p195 = scmp.lt.s32.totalorder %s194, 47
        %s196 = scalar_select %p195, %s194, 47
        %s197 = smul.addr %s196, 2
        %s198 = smul.addr %s197, 8
        %s199 = scalar_lea.vmem %s1, %s198
        %s200 = smul.u32 16, %s11
      $region32: #{tpu_custom_call.1} parent=23 // pred_fallthru
        _
      // Predicated region
      $region33: #{tpu_custom_call.1} parent=23 // pred_check
        %p201 = pneg %p83
      $region34: #{tpu_custom_call.1} parent=23 // pred_check_branch
        %203 = sbr.rel (%p201) target = $region36
      $region35: #{tpu_custom_call.1} parent=23 // pred_region
        %s204 = smul.u32 2, %s11
        %p205 = scmp.lt.s32.totalorder %s204, 5
        %s206 = scalar_select %p205, %s204, 5
        %s207 = smul.addr %s206, 4
        %s208 = scalar_lea.vmem %s2, %s207
        %s209 = smul.u32 2, %s11
      $region36: #{tpu_custom_call.1} parent=23 // pred_fallthru
        _
    $region24: #{tpu_custom_call.1} parent=5 // pred_fallthru
      _
    %p210 = scmp.le.s32.totalorder 1, %s11
    %p211 = scmp.lt.s32.totalorder %s11, 4
    %p212 = pnand %p210, %p211
    %p213 = pneg %p212
    // Predicated region
    $region37: #{tpu_custom_call.1} parent=5 // pred_check
      _
    $region38: #{tpu_custom_call.1} parent=5 // pred_check_branch
      %215 = sbr.rel (%p212) target = $region40
    $region39: #{tpu_custom_call.1} parent=5 // pred_region
      %s216 = ssub.s32 %s11, 1
      %s217 = smul.u32 2, %s16
      %p218 = scmp.lt.s32.totalorder %s217, 5
      %s219 = scalar_select %p218, %s217, 5
      %s220 = smul.addr %s219, 8
      %s221 = scalar_lea.vmem %s0, %s220
      %p222 = pneg %p37
      %p223 = pneg %p34
      %s224 = smul.u32 16, %s16
      %p225 = scmp.lt.s32.totalorder %s224, 47
      %s226 = scalar_select %p225, %s224, 47
      %s227 = smul.addr %s226, 2
      %s228 = smul.addr %s227, 8
      %s229 = scalar_lea.vmem %s1, %s228
      %p230 = pneg %p63
      %p231 = pneg %p60
      %s232 = smul.u32 2, %s16
      %p233 = scmp.lt.s32.totalorder %s232, 5
      %s234 = scalar_select %p233, %s232, 5
      %s235 = smul.addr %s234, 4
      %s236 = scalar_lea.vmem %s2, %s235
      %p237 = pneg %p89
      %p238 = pneg %p86
      %p239 = pneg %p110
      %p240 = pneg %p107
      %p241 = pneg %p131
      %p242 = pneg %p128
      %p243 = pneg %p157
      %p244 = pneg %p154
      %s245 = smul.u32 2, %s16
      %p246 = scmp.lt.s32.totalorder %s245, 5
      %s247 = scalar_select %p246, %s245, 5
      %s248 = smul.addr %s247, 8
      %s249 = scalar_lea.vmem %s5, %s248
      %s250 = smul.u32 2, %s16
      %p251 = scmp.lt.s32.totalorder %s250, 5
      %s252 = scalar_select %p251, %s250, 5
      %s253 = smul.addr %s252, 8
      %s254 = scalar_lea.vmem %s0, %s253
      %s255 = smul.u32 2, %s16
      %s256 = smul.u32 16, %s16
      %p257 = scmp.lt.s32.totalorder %s256, 47
      %s258 = scalar_select %p257, %s256, 47
      %s259 = smul.addr %s258, 2
      %s260 = smul.addr %s259, 8
      %s261 = scalar_lea.vmem %s1, %s260
      %s262 = smul.u32 16, %s16
      %s263 = smul.u32 2, %s16
      %p264 = scmp.lt.s32.totalorder %s263, 5
      %s265 = scalar_select %p264, %s263, 5
      %s266 = smul.addr %s265, 4
      %s267 = scalar_lea.vmem %s2, %s266
      %s268 = smul.u32 2, %s16
      %s269 = smul.u32 2, %s16
      %p270 = scmp.lt.s32.totalorder %s269, 5
      %s271 = scalar_select %p270, %s269, 5
      %s272 = smul.addr %s271, 8
      %s273 = scalar_lea.vmem %s5, %s272
      %s274 = smul.u32 2, %s16
      %v275 = vld [vmem:[%s254] sm:$0xff]
      %v276 = vld [vmem:[%s254 + $0x8] sm:$0xff]
      %v277 = vld [vmem:[%s261] sm:$0xff]
      %v278 = vld [vmem:[%s261 + $0x8] sm:$0xff]
      %v279 = vld [vmem:[%s261 + $0x10] sm:$0xff]
      %v280 = vld [vmem:[%s261 + $0x18] sm:$0xff]
      %v281 = vld [vmem:[%s261 + $0x20] sm:$0xff]
      %v282 = vld [vmem:[%s261 + $0x28] sm:$0xff]
      %v283 = vld [vmem:[%s261 + $0x30] sm:$0xff]
      %v284 = vld [vmem:[%s261 + $0x38] sm:$0xff]
      %v285 = vld [vmem:[%s261 + $0x40] sm:$0xff]
      %v286 = vld [vmem:[%s261 + $0x48] sm:$0xff]
      %v287 = vld [vmem:[%s261 + $0x50] sm:$0xff]
      %v288 = vld [vmem:[%s261 + $0x58] sm:$0xff]
      %v289 = vld [vmem:[%s261 + $0x60] sm:$0xff]
      %v290 = vld [vmem:[%s261 + $0x68] sm:$0xff]
      %v291 = vld [vmem:[%s261 + $0x70] sm:$0xff]
      %v292 = vld [vmem:[%s261 + $0x78] sm:$0xff]
      %v293 = vld [vmem:[%s261 + $0x80] sm:$0xff]
      %v294 = vld [vmem:[%s261 + $0x88] sm:$0xff]
      %v295 = vld [vmem:[%s261 + $0x90] sm:$0xff]
      %v296 = vld [vmem:[%s261 + $0x98] sm:$0xff]
      %v297 = vld [vmem:[%s261 + $0xa0] sm:$0xff]
      %v298 = vld [vmem:[%s261 + $0xa8] sm:$0xff]
      %v299 = vld [vmem:[%s261 + $0xb0] sm:$0xff]
      %v300 = vld [vmem:[%s261 + $0xb8] sm:$0xff]
      %v301 = vld [vmem:[%s261 + $0xc0] sm:$0xff]
      %v302 = vld [vmem:[%s261 + $0xc8] sm:$0xff]
      %v303 = vld [vmem:[%s261 + $0xd0] sm:$0xff]
      %v304 = vld [vmem:[%s261 + $0xd8] sm:$0xff]
      %v305 = vld [vmem:[%s261 + $0xe0] sm:$0xff]
      %v306 = vld [vmem:[%s261 + $0xe8] sm:$0xff]
      %v307 = vld [vmem:[%s261 + $0xf0] sm:$0xff]
      %v308 = vld [vmem:[%s261 + $0xf8] sm:$0xff]
      %v309 = vld [vmem:[%s267] sm:$0xf]
      %v310 = vld [vmem:[%s267 + $0x4] sm:$0xf]
      %v311 = vld [vmem:[%s3] sm:$0x1]
      %v313 = vperm.slane %v311, 0
      %v315 = vmul.f32 %v275, %v313
      %v316 = vmul.f32 %v276, %v313
      %vm317 = vcmask 261120
      %v318 = vsel %vm317, %v315, 0.0
      %319 = vadd.xlane.f32.xlu0 %v318
      %v320 = vpop.xlane.xlu0 %319
      %v321 = vsel %vm317, %v316, 0.0
      %322 = vadd.xlane.f32.xlu0 %v321
      %v323 = vpop.xlane.xlu0 %322
      %v324 = vld [vmem:[%s4] sm:$0x1]
      %v326 = vperm.slane %v324, 0
      %v328 = vmul.f32 %v277, %v326
      %v329 = vmul.f32 %v278, %v326
      %v330 = vmul.f32 %v279, %v326
      %v331 = vmul.f32 %v280, %v326
      %v332 = vmul.f32 %v281, %v326
      %v333 = vmul.f32 %v282, %v326
      %v334 = vmul.f32 %v283, %v326
      %v335 = vmul.f32 %v284, %v326
      %v336 = vmul.f32 %v285, %v326
      %v337 = vmul.f32 %v286, %v326
      %v338 = vmul.f32 %v287, %v326
      %v339 = vmul.f32 %v288, %v326
      %v340 = vmul.f32 %v289, %v326
      %v341 = vmul.f32 %v290, %v326
      %v342 = vmul.f32 %v291, %v326
      %v343 = vmul.f32 %v292, %v326
      %v344 = vmul.f32 %v293, %v326
      %v345 = vmul.f32 %v294, %v326
      %v346 = vmul.f32 %v295, %v326
      %v347 = vmul.f32 %v296, %v326
      %v348 = vmul.f32 %v297, %v326
      %v349 = vmul.f32 %v298, %v326
      %v350 = vmul.f32 %v299, %v326
      %v351 = vmul.f32 %v300, %v326
      %v352 = vmul.f32 %v301, %v326
      %v353 = vmul.f32 %v302, %v326
      %v354 = vmul.f32 %v303, %v326
      %v355 = vmul.f32 %v304, %v326
      %v356 = vmul.f32 %v305, %v326
      %v357 = vmul.f32 %v306, %v326
      %v358 = vmul.f32 %v307, %v326
      %v359 = vmul.f32 %v308, %v326
      %v360 = vsel %vm317, %v328, 0.0
      %361 = vadd.xlane.f32.xlu0 %v360
      %v362 = vpop.xlane.xlu0 %361
      %v363 = vsel %vm317, %v329, 0.0
      %364 = vadd.xlane.f32.xlu0 %v363
      %v365 = vpop.xlane.xlu0 %364
      %v366 = vsel %vm317, %v330, 0.0
      %367 = vadd.xlane.f32.xlu0 %v366
      %v368 = vpop.xlane.xlu0 %367
      %v369 = vsel %vm317, %v331, 0.0
      %370 = vadd.xlane.f32.xlu0 %v369
      %v371 = vpop.xlane.xlu0 %370
      %v372 = vsel %vm317, %v332, 0.0
      %373 = vadd.xlane.f32.xlu0 %v372
      %v374 = vpop.xlane.xlu0 %373
      %v375 = vsel %vm317, %v333, 0.0
      %376 = vadd.xlane.f32.xlu0 %v375
      %v377 = vpop.xlane.xlu0 %376
      %v378 = vsel %vm317, %v334, 0.0
      %379 = vadd.xlane.f32.xlu0 %v378
      %v380 = vpop.xlane.xlu0 %379
      %v381 = vsel %vm317, %v335, 0.0
      %382 = vadd.xlane.f32.xlu0 %v381
      %v383 = vpop.xlane.xlu0 %382
      %v384 = vsel %vm317, %v336, 0.0
      %385 = vadd.xlane.f32.xlu0 %v384
      %v386 = vpop.xlane.xlu0 %385
      %v387 = vsel %vm317, %v337, 0.0
      %388 = vadd.xlane.f32.xlu0 %v387
      %v389 = vpop.xlane.xlu0 %388
      %v390 = vsel %vm317, %v338, 0.0
      %391 = vadd.xlane.f32.xlu0 %v390
      %v392 = vpop.xlane.xlu0 %391
      %v393 = vsel %vm317, %v339, 0.0
      %394 = vadd.xlane.f32.xlu0 %v393
      %v395 = vpop.xlane.xlu0 %394
      %v396 = vsel %vm317, %v340, 0.0
      %397 = vadd.xlane.f32.xlu0 %v396
      %v398 = vpop.xlane.xlu0 %397
      %v399 = vsel %vm317, %v341, 0.0
      %400 = vadd.xlane.f32.xlu0 %v399
      %v401 = vpop.xlane.xlu0 %400
      %v402 = vsel %vm317, %v342, 0.0
      %403 = vadd.xlane.f32.xlu0 %v402
      %v404 = vpop.xlane.xlu0 %403
      %v405 = vsel %vm317, %v343, 0.0
      %406 = vadd.xlane.f32.xlu0 %v405
      %v407 = vpop.xlane.xlu0 %406
      %v408 = vsel %vm317, %v344, 0.0
      %409 = vadd.xlane.f32.xlu0 %v408
      %v410 = vpop.xlane.xlu0 %409
      %v411 = vsel %vm317, %v345, 0.0
      %412 = vadd.xlane.f32.xlu0 %v411
      %v413 = vpop.xlane.xlu0 %412
      %v414 = vsel %vm317, %v346, 0.0
      %415 = vadd.xlane.f32.xlu0 %v414
      %v416 = vpop.xlane.xlu0 %415
      %v417 = vsel %vm317, %v347, 0.0
      %418 = vadd.xlane.f32.xlu0 %v417
      %v419 = vpop.xlane.xlu0 %418
      %v420 = vsel %vm317, %v348, 0.0
      %421 = vadd.xlane.f32.xlu0 %v420
      %v422 = vpop.xlane.xlu0 %421
      %v423 = vsel %vm317, %v349, 0.0
      %424 = vadd.xlane.f32.xlu0 %v423
      %v425 = vpop.xlane.xlu0 %424
      %v426 = vsel %vm317, %v350, 0.0
      %427 = vadd.xlane.f32.xlu0 %v426
      %v428 = vpop.xlane.xlu0 %427
      %v429 = vsel %vm317, %v351, 0.0
      %430 = vadd.xlane.f32.xlu0 %v429
      %v431 = vpop.xlane.xlu0 %430
      %v432 = vsel %vm317, %v352, 0.0
      %433 = vadd.xlane.f32.xlu0 %v432
      %v434 = vpop.xlane.xlu0 %433
      %v435 = vsel %vm317, %v353, 0.0
      %436 = vadd.xlane.f32.xlu0 %v435
      %v437 = vpop.xlane.xlu0 %436
      %v438 = vsel %vm317, %v354, 0.0
      %439 = vadd.xlane.f32.xlu0 %v438
      %v440 = vpop.xlane.xlu0 %439
      %v441 = vsel %vm317, %v355, 0.0
      %442 = vadd.xlane.f32.xlu0 %v441
      %v443 = vpop.xlane.xlu0 %442
      %v444 = vsel %vm317, %v356, 0.0
      %445 = vadd.xlane.f32.xlu0 %v444
      %v446 = vpop.xlane.xlu0 %445
      %v447 = vsel %vm317, %v357, 0.0
      %448 = vadd.xlane.f32.xlu0 %v447
      %v449 = vpop.xlane.xlu0 %448
      %v450 = vsel %vm317, %v358, 0.0
      %451 = vadd.xlane.f32.xlu0 %v450
      %v452 = vpop.xlane.xlu0 %451
      %v453 = vsel %vm317, %v359, 0.0
      %454 = vadd.xlane.f32.xlu0 %v453
      %v455 = vpop.xlane.xlu0 %454
      %v488 = vlaneseq
      %v489 = vand.u32 %v488, 127
      %v490 = vperm.slane %v362, %v489
      %v491 = vadd.s32 %v489, 4294967288
      %v492 = vperm.slane %v365, %v491
      %vm493 = vcmask 130112
      %v494 = vsel %vm493, %v492, %v490
      %v495 = vperm.slane %v368, %v489
      %v496 = vperm.slane %v371, %v491
      %v497 = vsel %vm493, %v496, %v495
      %v498 = vperm.slane %v374, %v489
      %v499 = vperm.slane %v377, %v491
      %v500 = vsel %vm493, %v499, %v498
      %v501 = vperm.slane %v380, %v489
      %v502 = vperm.slane %v383, %v491
      %v503 = vsel %vm493, %v502, %v501
      %v504 = vperm.slane %v386, %v489
      %v505 = vperm.slane %v389, %v491
      %v506 = vsel %vm493, %v505, %v504
      %v507 = vperm.slane %v392, %v489
      %v508 = vperm.slane %v395, %v491
      %v509 = vsel %vm493, %v508, %v507
      %v510 = vperm.slane %v398, %v489
      %v511 = vperm.slane %v401, %v491
      %v512 = vsel %vm493, %v511, %v510
      %v513 = vperm.slane %v404, %v489
      %v514 = vperm.slane %v407, %v491
      %v515 = vsel %vm493, %v514, %v513
      %v516 = vperm.slane %v410, %v489
      %v517 = vperm.slane %v413, %v491
      %v518 = vsel %vm493, %v517, %v516
      %v519 = vperm.slane %v416, %v489
      %v520 = vperm.slane %v419, %v491
      %v521 = vsel %vm493, %v520, %v519
      %v522 = vperm.slane %v422, %v489
      %v523 = vperm.slane %v425, %v491
      %v524 = vsel %vm493, %v523, %v522
      %v525 = vperm.slane %v428, %v489
      %v526 = vperm.slane %v431, %v491
      %v527 = vsel %vm493, %v526, %v525
      %v528 = vperm.slane %v434, %v489
      %v529 = vperm.slane %v437, %v491
      %v530 = vsel %vm493, %v529, %v528
      %v531 = vperm.slane %v440, %v489
      %v532 = vperm.slane %v443, %v491
      %v533 = vsel %vm493, %v532, %v531
      %v534 = vperm.slane %v446, %v489
      %v535 = vperm.slane %v449, %v491
      %v536 = vsel %vm493, %v535, %v534
      %v537 = vperm.slane %v452, %v489
      %v538 = vperm.slane %v455, %v491
      %v539 = vsel %vm493, %v538, %v537
      %vm540 = vcmask 1041409
      %v541 = vsel %vm540, %v497, %v494
      %vm542 = vcmask 1042434
      %v543 = vsel %vm542, %v500, %v541
      %vm544 = vcmask 1043459
      %v545 = vsel %vm544, %v503, %v543
      %vm546 = vcmask 1044484
      %v547 = vsel %vm546, %v506, %v545
      %vm548 = vcmask 1045509
      %v549 = vsel %vm548, %v509, %v547
      %vm550 = vcmask 1046534
      %v551 = vsel %vm550, %v512, %v549
      %vm552 = vcmask 1047559
      %v553 = vsel %vm552, %v515, %v551
      %v554 = vsel %vm540, %v521, %v518
      %v555 = vsel %vm542, %v524, %v554
      %v556 = vsel %vm544, %v527, %v555
      %v557 = vsel %vm546, %v530, %v556
      %v558 = vsel %vm548, %v533, %v557
      %v559 = vsel %vm550, %v536, %v558
      %v560 = vsel %vm552, %v539, %v559
      %v563 = vadd.f32 %v320, %v553
      %v564 = vadd.f32 %v323, %v560
      %vm565 = vcmp.gt.f32.partialorder %v563, 0.0
      %vm566 = vcmp.gt.f32.partialorder %v564, 0.0
      %v567 = vmul.f32 %v563, 0.2
      %v568 = vmul.f32 %v564, 0.2
      %v569 = vsel %vm565, %v563, %v567
      %v570 = vsel %vm566, %v564, %v568
      %v571 = vunpack.c.l.bf16 %v309
      %v572 = vunpack.c.l.bf16 %v310
      %vm573 = vcmp.gt.f32.partialorder %v571, 0.0
      %vm574 = vcmp.gt.f32.partialorder %v572, 0.0
      %v575 = vsel %vm573, %v569, -9e+15
      %v576 = vsel %vm574, %v570, -9e+15
      %vm577 = vcmask 130048
      %v578 = vsel %vm577, %v575, -inf
      %579 = vmax.xlane.f32.xlu0 %v578
      %v580 = vpop.xlane.xlu0 %579
      %v581 = vsel %vm577, %v576, -inf
      %582 = vmax.xlane.f32.xlu0 %v581
      %v583 = vpop.xlane.xlu0 %582
      %v584 = vsub.f32 %v575, %v580
      %v585 = vsub.f32 %v576, %v583
      %v586 = vmul.f32 %v584, 1.442695
      %v587 = vpow.pop %v586
      %v588 = vmul.f32 %v585, 1.442695
      %v589 = vpow.pop %v588
      %v590 = vsel %vm577, %v587, 0.0
      %591 = vadd.xlane.f32.xlu0 %v590
      %v592 = vpop.xlane.xlu0 %591
      %v593 = vsel %vm577, %v589, 0.0
      %594 = vadd.xlane.f32.xlu0 %v593
      %v595 = vpop.xlane.xlu0 %594
      %v596 = vrcp.pop %v592
      %v597 = vmul.f32 %v592, %v596
      %v598 = vsub.f32 1.0, %v597
      %v599 = vmul.f32 %v596, %v598
      %v600 = vadd.f32 %v596, %v599
      %vm601 = vweird.f32 %v592
      %vm602 = vweird.f32 %v596
      %vm603 = vmor %vm601, %vm602
      %v604 = vsel %vm603, %v596, %v600
      %v605 = vand.u32 2147483647, %v592
      %vm606 = vcmp.eq.f32.partialorder %v605, 8.507059e+37
      %v607 = vand.u32 %v592, 2147483648
      %v608 = vor.u32 1.1754944e-38, %v607
      %v609 = vsel %vm606, %v608, %v604
      %v610 = vmul.f32 1.0, %v609
      %v611 = vrcp.pop %v595
      %v612 = vmul.f32 %v595, %v611
      %v613 = vsub.f32 1.0, %v612
      %v614 = vmul.f32 %v611, %v613
      %v615 = vadd.f32 %v611, %v614
      %vm616 = vweird.f32 %v595
      %vm617 = vweird.f32 %v611
      %vm618 = vmor %vm616, %vm617
      %v619 = vsel %vm618, %v611, %v615
      %v620 = vand.u32 2147483647, %v595
      %vm621 = vcmp.eq.f32.partialorder %v620, 8.507059e+37
      %v622 = vand.u32 %v595, 2147483648
      %v623 = vor.u32 1.1754944e-38, %v622
      %v624 = vsel %vm621, %v623, %v619
      %v625 = vmul.f32 1.0, %v624
      %v626 = vmul.f32 %v587, %v610
      %v627 = vmul.f32 %v589, %v625
      %v628 = vperm.slane %v626, 0
      %v629 = vlaneseq
      %v630 = vshrl.u32 %v629, 7
      %632 = vset.pattern.permute.xlu0 %v630
      %633 = vperm.xlu0 %632, %v628
      %v634 = vpop.permute.xlu0 %633
      %v635 = vlaneseq
      %v636 = vshrl.u32 %v635, 7
      %v637 = vadd.s32 %v636, 8
      %638 = vset.pattern.permute.xlu0 %v637
      %639 = vperm.xlu0 %638, %v628
      %v640 = vpop.permute.xlu0 %639
      %v641 = vperm.slane %v626, 1
      %v642 = vlaneseq
      %v643 = vshrl.u32 %v642, 7
      %645 = vset.pattern.permute.xlu0 %v643
      %646 = vperm.xlu0 %645, %v641
      %v647 = vpop.permute.xlu0 %646
      %v648 = vlaneseq
      %v649 = vshrl.u32 %v648, 7
      %v650 = vadd.s32 %v649, 8
      %651 = vset.pattern.permute.xlu0 %v650
      %652 = vperm.xlu0 %651, %v641
      %v653 = vpop.permute.xlu0 %652
      %v654 = vperm.slane %v626, 2
      %v655 = vlaneseq
      %v656 = vshrl.u32 %v655, 7
      %658 = vset.pattern.permute.xlu0 %v656
      %659 = vperm.xlu0 %658, %v654
      %v660 = vpop.permute.xlu0 %659
      %v661 = vlaneseq
      %v662 = vshrl.u32 %v661, 7
      %v663 = vadd.s32 %v662, 8
      %664 = vset.pattern.permute.xlu0 %v663
      %665 = vperm.xlu0 %664, %v654
      %v666 = vpop.permute.xlu0 %665
      %v667 = vperm.slane %v626, 3
      %v668 = vlaneseq
      %v669 = vshrl.u32 %v668, 7
      %671 = vset.pattern.permute.xlu0 %v669
      %672 = vperm.xlu0 %671, %v667
      %v673 = vpop.permute.xlu0 %672
      %v674 = vlaneseq
      %v675 = vshrl.u32 %v674, 7
      %v676 = vadd.s32 %v675, 8
      %677 = vset.pattern.permute.xlu0 %v676
      %678 = vperm.xlu0 %677, %v667
      %v679 = vpop.permute.xlu0 %678
      %v680 = vperm.slane %v626, 4
      %v681 = vlaneseq
      %v682 = vshrl.u32 %v681, 7
      %684 = vset.pattern.permute.xlu0 %v682
      %685 = vperm.xlu0 %684, %v680
      %v686 = vpop.permute.xlu0 %685
      %v687 = vlaneseq
      %v688 = vshrl.u32 %v687, 7
      %v689 = vadd.s32 %v688, 8
      %690 = vset.pattern.permute.xlu0 %v689
      %691 = vperm.xlu0 %690, %v680
      %v692 = vpop.permute.xlu0 %691
      %v693 = vperm.slane %v626, 5
      %v694 = vlaneseq
      %v695 = vshrl.u32 %v694, 7
      %697 = vset.pattern.permute.xlu0 %v695
      %698 = vperm.xlu0 %697, %v693
      %v699 = vpop.permute.xlu0 %698
      %v700 = vlaneseq
      %v701 = vshrl.u32 %v700, 7
      %v702 = vadd.s32 %v701, 8
      %703 = vset.pattern.permute.xlu0 %v702
      %704 = vperm.xlu0 %703, %v693
      %v705 = vpop.permute.xlu0 %704
      %v706 = vperm.slane %v626, 6
      %v707 = vlaneseq
      %v708 = vshrl.u32 %v707, 7
      %710 = vset.pattern.permute.xlu0 %v708
      %711 = vperm.xlu0 %710, %v706
      %v712 = vpop.permute.xlu0 %711
      %v713 = vlaneseq
      %v714 = vshrl.u32 %v713, 7
      %v715 = vadd.s32 %v714, 8
      %716 = vset.pattern.permute.xlu0 %v715
      %717 = vperm.xlu0 %716, %v706
      %v718 = vpop.permute.xlu0 %717
      %v719 = vperm.slane %v626, 7
      %v720 = vlaneseq
      %v721 = vshrl.u32 %v720, 7
      %723 = vset.pattern.permute.xlu0 %v721
      %724 = vperm.xlu0 %723, %v719
      %v725 = vpop.permute.xlu0 %724
      %v726 = vlaneseq
      %v727 = vshrl.u32 %v726, 7
      %v728 = vadd.s32 %v727, 8
      %729 = vset.pattern.permute.xlu0 %v728
      %730 = vperm.xlu0 %729, %v719
      %v731 = vpop.permute.xlu0 %730
      %v732 = vperm.slane %v627, 0
      %v733 = vlaneseq
      %v734 = vshrl.u32 %v733, 7
      %736 = vset.pattern.permute.xlu0 %v734
      %737 = vperm.xlu0 %736, %v732
      %v738 = vpop.permute.xlu0 %737
      %v739 = vlaneseq
      %v740 = vshrl.u32 %v739, 7
      %v741 = vadd.s32 %v740, 8
      %742 = vset.pattern.permute.xlu0 %v741
      %743 = vperm.xlu0 %742, %v732
      %v744 = vpop.permute.xlu0 %743
      %v745 = vperm.slane %v627, 1
      %v746 = vlaneseq
      %v747 = vshrl.u32 %v746, 7
      %749 = vset.pattern.permute.xlu0 %v747
      %750 = vperm.xlu0 %749, %v745
      %v751 = vpop.permute.xlu0 %750
      %v752 = vlaneseq
      %v753 = vshrl.u32 %v752, 7
      %v754 = vadd.s32 %v753, 8
      %755 = vset.pattern.permute.xlu0 %v754
      %756 = vperm.xlu0 %755, %v745
      %v757 = vpop.permute.xlu0 %756
      %v758 = vperm.slane %v627, 2
      %v759 = vlaneseq
      %v760 = vshrl.u32 %v759, 7
      %762 = vset.pattern.permute.xlu0 %v760
      %763 = vperm.xlu0 %762, %v758
      %v764 = vpop.permute.xlu0 %763
      %v765 = vlaneseq
      %v766 = vshrl.u32 %v765, 7
      %v767 = vadd.s32 %v766, 8
      %768 = vset.pattern.permute.xlu0 %v767
      %769 = vperm.xlu0 %768, %v758
      %v770 = vpop.permute.xlu0 %769
      %v771 = vperm.slane %v627, 3
      %v772 = vlaneseq
      %v773 = vshrl.u32 %v772, 7
      %775 = vset.pattern.permute.xlu0 %v773
      %776 = vperm.xlu0 %775, %v771
      %v777 = vpop.permute.xlu0 %776
      %v778 = vlaneseq
      %v779 = vshrl.u32 %v778, 7
      %v780 = vadd.s32 %v779, 8
      %781 = vset.pattern.permute.xlu0 %v780
      %782 = vperm.xlu0 %781, %v771
      %v783 = vpop.permute.xlu0 %782
      %v784 = vperm.slane %v627, 4
      %v785 = vlaneseq
      %v786 = vshrl.u32 %v785, 7
      %788 = vset.pattern.permute.xlu0 %v786
      %789 = vperm.xlu0 %788, %v784
      %v790 = vpop.permute.xlu0 %789
      %v791 = vlaneseq
      %v792 = vshrl.u32 %v791, 7
      %v793 = vadd.s32 %v792, 8
      %794 = vset.pattern.permute.xlu0 %v793
      %795 = vperm.xlu0 %794, %v784
      %v796 = vpop.permute.xlu0 %795
      %v797 = vperm.slane %v627, 5
      %v798 = vlaneseq
      %v799 = vshrl.u32 %v798, 7
      %801 = vset.pattern.permute.xlu0 %v799
      %802 = vperm.xlu0 %801, %v797
      %v803 = vpop.permute.xlu0 %802
      %v804 = vlaneseq
      %v805 = vshrl.u32 %v804, 7
      %v806 = vadd.s32 %v805, 8
      %807 = vset.pattern.permute.xlu0 %v806
      %808 = vperm.xlu0 %807, %v797
      %v809 = vpop.permute.xlu0 %808
      %v810 = vperm.slane %v627, 6
      %v811 = vlaneseq
      %v812 = vshrl.u32 %v811, 7
      %814 = vset.pattern.permute.xlu0 %v812
      %815 = vperm.xlu0 %814, %v810
      %v816 = vpop.permute.xlu0 %815
      %v817 = vlaneseq
      %v818 = vshrl.u32 %v817, 7
      %v819 = vadd.s32 %v818, 8
      %820 = vset.pattern.permute.xlu0 %v819
      %821 = vperm.xlu0 %820, %v810
      %v822 = vpop.permute.xlu0 %821
      %v823 = vperm.slane %v627, 7
      %v824 = vlaneseq
      %v825 = vshrl.u32 %v824, 7
      %827 = vset.pattern.permute.xlu0 %v825
      %828 = vperm.xlu0 %827, %v823
      %v829 = vpop.permute.xlu0 %828
      %v830 = vlaneseq
      %v831 = vshrl.u32 %v830, 7
      %v832 = vadd.s32 %v831, 8
      %833 = vset.pattern.permute.xlu0 %v832
      %834 = vperm.xlu0 %833, %v823
      %v835 = vpop.permute.xlu0 %834
      %v836 = vmul.f32 %v634, %v277
      %v837 = vmul.f32 %v640, %v278
      %v838 = vmul.f32 %v647, %v279
      %v839 = vmul.f32 %v653, %v280
      %v840 = vmul.f32 %v660, %v281
      %v841 = vmul.f32 %v666, %v282
      %v842 = vmul.f32 %v673, %v283
      %v843 = vmul.f32 %v679, %v284
      %v844 = vmul.f32 %v686, %v285
      %v845 = vmul.f32 %v692, %v286
      %v846 = vmul.f32 %v699, %v287
      %v847 = vmul.f32 %v705, %v288
      %v848 = vmul.f32 %v712, %v289
      %v849 = vmul.f32 %v718, %v290
      %v850 = vmul.f32 %v725, %v291
      %v851 = vmul.f32 %v731, %v292
      %v852 = vmul.f32 %v738, %v293
      %v853 = vmul.f32 %v744, %v294
      %v854 = vmul.f32 %v751, %v295
      %v855 = vmul.f32 %v757, %v296
      %v856 = vmul.f32 %v764, %v297
      %v857 = vmul.f32 %v770, %v298
      %v858 = vmul.f32 %v777, %v299
      %v859 = vmul.f32 %v783, %v300
      %v860 = vmul.f32 %v790, %v301
      %v861 = vmul.f32 %v796, %v302
      %v862 = vmul.f32 %v803, %v303
      %v863 = vmul.f32 %v809, %v304
      %v864 = vmul.f32 %v816, %v305
      %v865 = vmul.f32 %v822, %v306
      %v866 = vmul.f32 %v829, %v307
      %v867 = vmul.f32 %v835, %v308
      %v868 = vsel %vm317, %v836, 0.0
      %v869 = vsel %vm317, %v837, 0.0
      %v870 = vadd.f32 %v868, %v869
      %v871 = vrot.slane %v870, 4
      %v872 = vadd.f32 %v870, %v871
      %v873 = vrot.slane %v872, 2
      %v874 = vadd.f32 %v872, %v873
      %v875 = vrot.slane %v874, 1
      %v876 = vadd.f32 %v874, %v875
      %v877 = vsel %vm317, %v838, 0.0
      %v878 = vsel %vm317, %v839, 0.0
      %v879 = vadd.f32 %v877, %v878
      %v880 = vrot.slane %v879, 4
      %v881 = vadd.f32 %v879, %v880
      %v882 = vrot.slane %v881, 2
      %v883 = vadd.f32 %v881, %v882
      %v884 = vrot.slane %v883, 1
      %v885 = vadd.f32 %v883, %v884
      %v886 = vsel %vm317, %v840, 0.0
      %v887 = vsel %vm317, %v841, 0.0
      %v888 = vadd.f32 %v886, %v887
      %v889 = vrot.slane %v888, 4
      %v890 = vadd.f32 %v888, %v889
      %v891 = vrot.slane %v890, 2
      %v892 = vadd.f32 %v890, %v891
      %v893 = vrot.slane %v892, 1
      %v894 = vadd.f32 %v892, %v893
      %v895 = vsel %vm317, %v842, 0.0
      %v896 = vsel %vm317, %v843, 0.0
      %v897 = vadd.f32 %v895, %v896
      %v898 = vrot.slane %v897, 4
      %v899 = vadd.f32 %v897, %v898
      %v900 = vrot.slane %v899, 2
      %v901 = vadd.f32 %v899, %v900
      %v902 = vrot.slane %v901, 1
      %v903 = vadd.f32 %v901, %v902
      %v904 = vsel %vm317, %v844, 0.0
      %v905 = vsel %vm317, %v845, 0.0
      %v906 = vadd.f32 %v904, %v905
      %v907 = vrot.slane %v906, 4
      %v908 = vadd.f32 %v906, %v907
      %v909 = vrot.slane %v908, 2
      %v910 = vadd.f32 %v908, %v909
      %v911 = vrot.slane %v910, 1
      %v912 = vadd.f32 %v910, %v911
      %v913 = vsel %vm317, %v846, 0.0
      %v914 = vsel %vm317, %v847, 0.0
      %v915 = vadd.f32 %v913, %v914
      %v916 = vrot.slane %v915, 4
      %v917 = vadd.f32 %v915, %v916
      %v918 = vrot.slane %v917, 2
      %v919 = vadd.f32 %v917, %v918
      %v920 = vrot.slane %v919, 1
      %v921 = vadd.f32 %v919, %v920
      %v922 = vsel %vm317, %v848, 0.0
      %v923 = vsel %vm317, %v849, 0.0
      %v924 = vadd.f32 %v922, %v923
      %v925 = vrot.slane %v924, 4
      %v926 = vadd.f32 %v924, %v925
      %v927 = vrot.slane %v926, 2
      %v928 = vadd.f32 %v926, %v927
      %v929 = vrot.slane %v928, 1
      %v930 = vadd.f32 %v928, %v929
      %v931 = vsel %vm317, %v850, 0.0
      %v932 = vsel %vm317, %v851, 0.0
      %v933 = vadd.f32 %v931, %v932
      %v934 = vrot.slane %v933, 4
      %v935 = vadd.f32 %v933, %v934
      %v936 = vrot.slane %v935, 2
      %v937 = vadd.f32 %v935, %v936
      %v938 = vrot.slane %v937, 1
      %v939 = vadd.f32 %v937, %v938
      %v940 = vsel %vm317, %v852, 0.0
      %v941 = vsel %vm317, %v853, 0.0
      %v942 = vadd.f32 %v940, %v941
      %v943 = vrot.slane %v942, 4
      %v944 = vadd.f32 %v942, %v943
      %v945 = vrot.slane %v944, 2
      %v946 = vadd.f32 %v944, %v945
      %v947 = vrot.slane %v946, 1
      %v948 = vadd.f32 %v946, %v947
      %v949 = vsel %vm317, %v854, 0.0
      %v950 = vsel %vm317, %v855, 0.0
      %v951 = vadd.f32 %v949, %v950
      %v952 = vrot.slane %v951, 4
      %v953 = vadd.f32 %v951, %v952
      %v954 = vrot.slane %v953, 2
      %v955 = vadd.f32 %v953, %v954
      %v956 = vrot.slane %v955, 1
      %v957 = vadd.f32 %v955, %v956
      %v958 = vsel %vm317, %v856, 0.0
      %v959 = vsel %vm317, %v857, 0.0
      %v960 = vadd.f32 %v958, %v959
      %v961 = vrot.slane %v960, 4
      %v962 = vadd.f32 %v960, %v961
      %v963 = vrot.slane %v962, 2
      %v964 = vadd.f32 %v962, %v963
      %v965 = vrot.slane %v964, 1
      %v966 = vadd.f32 %v964, %v965
      %v967 = vsel %vm317, %v858, 0.0
      %v968 = vsel %vm317, %v859, 0.0
      %v969 = vadd.f32 %v967, %v968
      %v970 = vrot.slane %v969, 4
      %v971 = vadd.f32 %v969, %v970
      %v972 = vrot.slane %v971, 2
      %v973 = vadd.f32 %v971, %v972
      %v974 = vrot.slane %v973, 1
      %v975 = vadd.f32 %v973, %v974
      %v976 = vsel %vm317, %v860, 0.0
      %v977 = vsel %vm317, %v861, 0.0
      %v978 = vadd.f32 %v976, %v977
      %v979 = vrot.slane %v978, 4
      %v980 = vadd.f32 %v978, %v979
      %v981 = vrot.slane %v980, 2
      %v982 = vadd.f32 %v980, %v981
      %v983 = vrot.slane %v982, 1
      %v984 = vadd.f32 %v982, %v983
      %v985 = vsel %vm317, %v862, 0.0
      %v986 = vsel %vm317, %v863, 0.0
      %v987 = vadd.f32 %v985, %v986
      %v988 = vrot.slane %v987, 4
      %v989 = vadd.f32 %v987, %v988
      %v990 = vrot.slane %v989, 2
      %v991 = vadd.f32 %v989, %v990
      %v992 = vrot.slane %v991, 1
      %v993 = vadd.f32 %v991, %v992
      %v994 = vsel %vm317, %v864, 0.0
      %v995 = vsel %vm317, %v865, 0.0
      %v996 = vadd.f32 %v994, %v995
      %v997 = vrot.slane %v996, 4
      %v998 = vadd.f32 %v996, %v997
      %v999 = vrot.slane %v998, 2
      %v1000 = vadd.f32 %v998, %v999
      %v1001 = vrot.slane %v1000, 1
      %v1002 = vadd.f32 %v1000, %v1001
      %v1003 = vsel %vm317, %v866, 0.0
      %v1004 = vsel %vm317, %v867, 0.0
      %v1005 = vadd.f32 %v1003, %v1004
      %v1006 = vrot.slane %v1005, 4
      %v1007 = vadd.f32 %v1005, %v1006
      %v1008 = vrot.slane %v1007, 2
      %v1009 = vadd.f32 %v1007, %v1008
      %v1010 = vrot.slane %v1009, 1
      %v1011 = vadd.f32 %v1009, %v1010
      %v1014 = vrot.slane %v275, 1
      %v1015 = vrot.slane %v275, 2
      %v1016 = vrot.slane %v275, 3
      %v1017 = vrot.slane %v275, 4
      %v1018 = vrot.slane %v275, 5
      %v1019 = vrot.slane %v275, 6
      %v1020 = vrot.slane %v275, 7
      %v1021 = vrot.slane %v276, 1
      %v1022 = vrot.slane %v276, 2
      %v1023 = vrot.slane %v276, 3
      %v1024 = vrot.slane %v276, 4
      %v1025 = vrot.slane %v276, 5
      %v1026 = vrot.slane %v276, 6
      %v1027 = vrot.slane %v276, 7
      %v1044 = vadd.f32 %v876, %v275
      %v1045 = vadd.f32 %v885, %v1014
      %v1046 = vadd.f32 %v894, %v1015
      %v1047 = vadd.f32 %v903, %v1016
      %v1048 = vadd.f32 %v912, %v1017
      %v1049 = vadd.f32 %v921, %v1018
      %v1050 = vadd.f32 %v930, %v1019
      %v1051 = vadd.f32 %v939, %v1020
      %v1052 = vadd.f32 %v948, %v276
      %v1053 = vadd.f32 %v957, %v1021
      %v1054 = vadd.f32 %v966, %v1022
      %v1055 = vadd.f32 %v975, %v1023
      %v1056 = vadd.f32 %v984, %v1024
      %v1057 = vadd.f32 %v993, %v1025
      %v1058 = vadd.f32 %v1002, %v1026
      %v1059 = vadd.f32 %v1011, %v1027
      %vm1060 = vcmp.gt.f32.partialorder %v1044, 0.0
      %vm1061 = vcmp.gt.f32.partialorder %v1045, 0.0
      %vm1062 = vcmp.gt.f32.partialorder %v1046, 0.0
      %vm1063 = vcmp.gt.f32.partialorder %v1047, 0.0
      %vm1064 = vcmp.gt.f32.partialorder %v1048, 0.0
      %vm1065 = vcmp.gt.f32.partialorder %v1049, 0.0
      %vm1066 = vcmp.gt.f32.partialorder %v1050, 0.0
      %vm1067 = vcmp.gt.f32.partialorder %v1051, 0.0
      %vm1068 = vcmp.gt.f32.partialorder %v1052, 0.0
      %vm1069 = vcmp.gt.f32.partialorder %v1053, 0.0
      %vm1070 = vcmp.gt.f32.partialorder %v1054, 0.0
      %vm1071 = vcmp.gt.f32.partialorder %v1055, 0.0
      %vm1072 = vcmp.gt.f32.partialorder %v1056, 0.0
      %vm1073 = vcmp.gt.f32.partialorder %v1057, 0.0
      %vm1074 = vcmp.gt.f32.partialorder %v1058, 0.0
      %vm1075 = vcmp.gt.f32.partialorder %v1059, 0.0
      %v1076 = vmin.f32 %v1044, 0.0
      %v1077 = vmin.f32 %v1045, 0.0
      %v1078 = vmin.f32 %v1046, 0.0
      %v1079 = vmin.f32 %v1047, 0.0
      %v1080 = vmin.f32 %v1048, 0.0
      %v1081 = vmin.f32 %v1049, 0.0
      %v1082 = vmin.f32 %v1050, 0.0
      %v1083 = vmin.f32 %v1051, 0.0
      %v1084 = vmin.f32 %v1052, 0.0
      %v1085 = vmin.f32 %v1053, 0.0
      %v1086 = vmin.f32 %v1054, 0.0
      %v1087 = vmin.f32 %v1055, 0.0
      %v1088 = vmin.f32 %v1056, 0.0
      %v1089 = vmin.f32 %v1057, 0.0
      %v1090 = vmin.f32 %v1058, 0.0
      %v1091 = vmin.f32 %v1059, 0.0
      %v1092 = vmul.f32 %v1076, 1.442695
      %v1093 = vpow.pop %v1092
      %v1094 = vmul.f32 %v1077, 1.442695
      %v1095 = vpow.pop %v1094
      %v1096 = vmul.f32 %v1078, 1.442695
      %v1097 = vpow.pop %v1096
      %v1098 = vmul.f32 %v1079, 1.442695
      %v1099 = vpow.pop %v1098
      %v1100 = vmul.f32 %v1080, 1.442695
      %v1101 = vpow.pop %v1100
      %v1102 = vmul.f32 %v1081, 1.442695
      %v1103 = vpow.pop %v1102
      %v1104 = vmul.f32 %v1082, 1.442695
      %v1105 = vpow.pop %v1104
      %v1106 = vmul.f32 %v1083, 1.442695
      %v1107 = vpow.pop %v1106
      %v1108 = vmul.f32 %v1084, 1.442695
      %v1109 = vpow.pop %v1108
      %v1110 = vmul.f32 %v1085, 1.442695
      %v1111 = vpow.pop %v1110
      %v1112 = vmul.f32 %v1086, 1.442695
      %v1113 = vpow.pop %v1112
      %v1114 = vmul.f32 %v1087, 1.442695
      %v1115 = vpow.pop %v1114
      %v1116 = vmul.f32 %v1088, 1.442695
      %v1117 = vpow.pop %v1116
      %v1118 = vmul.f32 %v1089, 1.442695
      %v1119 = vpow.pop %v1118
      %v1120 = vmul.f32 %v1090, 1.442695
      %v1121 = vpow.pop %v1120
      %v1122 = vmul.f32 %v1091, 1.442695
      %v1123 = vpow.pop %v1122
      %v1124 = vsub.f32 %v1093, 1.0
      %v1125 = vsub.f32 %v1095, 1.0
      %v1126 = vsub.f32 %v1097, 1.0
      %v1127 = vsub.f32 %v1099, 1.0
      %v1128 = vsub.f32 %v1101, 1.0
      %v1129 = vsub.f32 %v1103, 1.0
      %v1130 = vsub.f32 %v1105, 1.0
      %v1131 = vsub.f32 %v1107, 1.0
      %v1132 = vsub.f32 %v1109, 1.0
      %v1133 = vsub.f32 %v1111, 1.0
      %v1134 = vsub.f32 %v1113, 1.0
      %v1135 = vsub.f32 %v1115, 1.0
      %v1136 = vsub.f32 %v1117, 1.0
      %v1137 = vsub.f32 %v1119, 1.0
      %v1138 = vsub.f32 %v1121, 1.0
      %v1139 = vsub.f32 %v1123, 1.0
      %v1140 = vsel %vm1060, %v1044, %v1124
      %v1141 = vsel %vm1061, %v1045, %v1125
      %v1142 = vsel %vm1062, %v1046, %v1126
      %v1143 = vsel %vm1063, %v1047, %v1127
      %v1144 = vsel %vm1064, %v1048, %v1128
      %v1145 = vsel %vm1065, %v1049, %v1129
      %v1146 = vsel %vm1066, %v1050, %v1130
      %v1147 = vsel %vm1067, %v1051, %v1131
      %v1148 = vsel %vm1068, %v1052, %v1132
      %v1149 = vsel %vm1069, %v1053, %v1133
      %v1150 = vsel %vm1070, %v1054, %v1134
      %v1151 = vsel %vm1071, %v1055, %v1135
      %v1152 = vsel %vm1072, %v1056, %v1136
      %v1153 = vsel %vm1073, %v1057, %v1137
      %v1154 = vsel %vm1074, %v1058, %v1138
      %v1155 = vsel %vm1075, %v1059, %v1139
      %v1172 = vrot.slane %v1141, 7
      %v1173 = vsel %vm540, %v1172, %v1140
      %v1174 = vrot.slane %v1142, 6
      %v1175 = vsel %vm542, %v1174, %v1173
      %v1176 = vrot.slane %v1143, 5
      %v1177 = vsel %vm544, %v1176, %v1175
      %v1178 = vrot.slane %v1144, 4
      %v1179 = vsel %vm546, %v1178, %v1177
      %v1180 = vrot.slane %v1145, 3
      %v1181 = vsel %vm548, %v1180, %v1179
      %v1182 = vrot.slane %v1146, 2
      %v1183 = vsel %vm550, %v1182, %v1181
      %v1184 = vrot.slane %v1147, 1
      %v1185 = vsel %vm552, %v1184, %v1183
      %v1186 = vrot.slane %v1149, 7
      %v1187 = vsel %vm540, %v1186, %v1148
      %v1188 = vrot.slane %v1150, 6
      %v1189 = vsel %vm542, %v1188, %v1187
      %v1190 = vrot.slane %v1151, 5
      %v1191 = vsel %vm544, %v1190, %v1189
      %v1192 = vrot.slane %v1152, 4
      %v1193 = vsel %vm546, %v1192, %v1191
      %v1194 = vrot.slane %v1153, 3
      %v1195 = vsel %vm548, %v1194, %v1193
      %v1196 = vrot.slane %v1154, 2
      %v1197 = vsel %vm550, %v1196, %v1195
      %v1198 = vrot.slane %v1155, 1
      %v1199 = vsel %vm552, %v1198, %v1197
      %1202 = vst.msk [vmem:[%s273] sm:$0xff] %vm317, %v1185
      %1203 = vst.msk [vmem:[%s273 + $0x8] sm:$0xff] %vm317, %v1199
      %s1204 = smul.u32 2, %s16
      %p1205 = scmp.lt.s32.totalorder %s1204, 5
      %s1206 = scalar_select %p1205, %s1204, 5
      %s1207 = smul.addr %s1206, 8
      %s1208 = scalar_lea.vmem %s5, %s1207
      // Predicated region
      $region41: #{tpu_custom_call.1} parent=39 // pred_check
        %p1209 = pneg %p154
      $region42: #{tpu_custom_call.1} parent=39 // pred_check_branch
        %1211 = sbr.rel (%p1209) target = $region44
      $region43: #{tpu_custom_call.1} parent=39 // pred_region
        %s1212 = smul.u32 2, %s16
      $region44: #{tpu_custom_call.1} parent=39 // pred_fallthru
        _
    $region40: #{tpu_custom_call.1} parent=5 // pred_fallthru
      _
    %p1213 = scmp.le.s32.totalorder 2, %s11
    // Predicated region
    $region45: #{tpu_custom_call.1} parent=5 // pred_check
      %p1214 = pneg %p1213
    $region46: #{tpu_custom_call.1} parent=5 // pred_check_branch
      %1216 = sbr.rel (%p1214) target = $region48
    $region47: #{tpu_custom_call.1} parent=5 // pred_region
      %s1217 = ssub.s32 %s11, 2
      // Predicated region
      $region49: #{tpu_custom_call.1} parent=47 // pred_check
        %p1218 = pneg %p160
      $region50: #{tpu_custom_call.1} parent=47 // pred_check_branch
        %1220 = sbr.rel (%p1218) target = $region52
      $region51: #{tpu_custom_call.1} parent=47 // pred_region
        %s1221 = smul.u32 2, %s17
        %p1222 = scmp.lt.s32.totalorder %s1221, 5
        %s1223 = scalar_select %p1222, %s1221, 5
        %s1224 = smul.addr %s1223, 8
        %s1225 = scalar_lea.vmem %s5, %s1224
      $region52: #{tpu_custom_call.1} parent=47 // pred_fallthru
        _
    $region48: #{tpu_custom_call.1} parent=5 // pred_fallthru
      _
  $region6: #{tpu_custom_call.1} parent=0 // loop_footer
    %s15 = sadd.s32 1, %s11
  $region7: #{tpu_custom_call.1} parent=0 // loop_footer_branch
    %10 = sbr.rel target = $region3
  $region8: #{tpu_custom_call.1} parent=0 // loop_exit
    _

</llo_original>
